<compile_context>
chip_gen: v5e
topology: v5e:2x2
jax: 0.10.0
libtpu: 0.0.40
codegen_flags: <defaults>
</compile_context>

<pallas_src>
import functools

import jax
import jax.numpy as jnp
from jax import lax
from jax.experimental import pallas as pl
from jax.experimental.pallas import tpu as pltpu

_LANES = 128
_SUBLANES = 8
_CHUNK_ROWS = 512                 # rows per fused softplus+accumulate chunk
_ACC_ROWS = 32                    # partial-accumulator rows (ILP for the VALU)
_TILE_BYTES = 4 * 1024 * 1024     # target bytes per input tile (double-buffered)
_MAX_TILE_ROWS = 16384
_VMEM_LIMIT_BYTES = 32 * 1024 * 1024


def _round_up(x: int, m: int) -> int:
    return ((x + m - 1) // m) * m


def _bf16_math_supported() -> bool:
    """bf16 VPU/EUP exists on v6e and newer; keep f32 math on v5e/v4/older."""
    try:
        kind = jax.devices()[0].device_kind.lower()
    except Exception:
        return False
    return any(tag in kind for tag in ("v6", "v7", "tpu7", "7x"))


_BF16_MATH = _bf16_math_supported()


def _bce_partial_sums_kernel(x_ref, out_ref, *, target_is_one, tile_r, chunk,
                             acc_rows, rows_total, compute_dtype, need_mask):
    """Per-grid-step (acc_rows, W) f32 partial sum of the specialized BCE loss."""
    w = x_ref.shape[-1]
    n_chunks = tile_r // chunk
    groups = chunk // acc_rows

    if need_mask:
        # Rows of the logical array still valid inside this tile. For all but
        # the ragged last tile this is >= tile_r, so one code path serves both.
        valid = rows_total - pl.program_id(0) * tile_r
        base_row = lax.broadcasted_iota(jnp.int32, (chunk, w), 0)  # hoisted once

    def chunk_partial(c):
        start = c * chunk
        if not isinstance(start, int):
            start = pl.multiple_of(start, chunk)
        xc = x_ref[pl.ds(start, chunk), :].astype(compute_dtype)
        z = -xc if target_is_one else xc
        # softplus(z) = max(z, 0) + log1p(exp(-|z|))   (numerically stable)
        loss = (jnp.maximum(z, 0.0) + jnp.log1p(jnp.exp(-jnp.abs(z)))
                ).astype(jnp.float32)
        if need_mask:
            loss = jnp.where(base_row < (valid - c * chunk), loss, 0.0)
        if groups > 1:
            # Fold chunk rows onto acc_rows accumulator rows: sublane regroup +
            # independent VPU adds, no cross-lane XLU work.
            loss = loss.reshape(groups, acc_rows, w).sum(axis=0)
        return loss

    if n_chunks == 1:
        out_ref[...] = chunk_partial(0)
    else:
        acc0 = jnp.zeros((acc_rows, w), jnp.float32)
        out_ref[...] = lax.fori_loop(
            0, n_chunks, lambda c, acc: acc + chunk_partial(c), acc0,
            unroll=min(n_chunks, 8))


@functools.partial(jax.jit, static_argnames=("mode", "isreal"))
def bloss(output_d, mode: str, isreal: bool = True):
    """Pallas implementation of BLoss.forward (mean BCE-with-logits)."""
    assert mode in ("g", "d")
    target_is_one = (mode == "g") or bool(isreal)

    x = jnp.asarray(output_d)
    n = int(x.size)
    if n == 0:
        return jnp.zeros((), jnp.float32)

    # Collapse LEADING dims only: the trailing dim keeps its lane placement, so
    # this reshape never forces an HBM relayout copy (unlike flattening a
    # non-lane-aligned NCHW tensor to (-1, 128)).
    x2d = x.reshape(-1, x.shape[-1]) if x.ndim >= 2 else x.reshape(1, -1)
    rows, width = int(x2d.shape[0]), int(x2d.shape[1])

    in_dtype = x2d.dtype
    compute_dtype = (jnp.bfloat16
                     if (in_dtype == jnp.bfloat16 and _BF16_MATH)
                     else jnp.float32)

    # Row-tile sizing: biggest tile that fits the per-buffer byte budget.
    itemsize = jnp.dtype(in_dtype).itemsize
    width_padded = _round_up(width, _LANES)
    tile_r = max(_SUBLANES,
                 (_TILE_BYTES // (width_padded * itemsize)) // _SUBLANES * _SUBLANES)
    tile_r = min(tile_r, _MAX_TILE_ROWS, _round_up(rows, _SUBLANES))
    if tile_r >= _CHUNK_ROWS:
        tile_r = (tile_r // _CHUNK_ROWS) * _CHUNK_ROWS
        chunk = _CHUNK_ROWS
    else:
        chunk = tile_r
    acc_rows = _ACC_ROWS if chunk % _ACC_ROWS == 0 else _SUBLANES

    n_tiles = pl.cdiv(rows, tile_r)
    need_mask = (rows % tile_r) != 0

    kernel = functools.partial(
        _bce_partial_sums_kernel,
        target_is_one=target_is_one,
        tile_r=tile_r,
        chunk=chunk,
        acc_rows=acc_rows,
        rows_total=rows,
        compute_dtype=compute_dtype,
        need_mask=need_mask,
    )

    out_rows = n_tiles * acc_rows
    partials = pl.pallas_call(
        kernel,
        out_shape=jax.ShapeDtypeStruct((out_rows, width), jnp.float32),
        grid_spec=pltpu.PrefetchScalarGridSpec(
            num_scalar_prefetch=0,
            grid=(n_tiles,),
            in_specs=[pl.BlockSpec((tile_r, width), lambda i: (i, 0))],
            out_specs=pl.BlockSpec((acc_rows, width), lambda i: (i, 0)),
        ),
        compiler_params=pltpu.CompilerParams(
            dimension_semantics=("parallel",),  # shards row tiles across TCs
            vmem_limit_bytes=_VMEM_LIMIT_BYTES,
        ),
        cost_estimate=pl.CostEstimate(
            flops=6 * n,
            transcendentals=2 * n,
            bytes_accessed=n * itemsize + out_rows * width * 4,
        ),
    )(x2d)

    total = jnp.sum(partials, dtype=jnp.float32)
    return (total / n).astype(jnp.float32)


def _reference_bce_with_logits(x, target):
    x = jnp.asarray(x, jnp.float32)
    loss = jnp.maximum(x, 0.0) - x * target + jnp.log1p(jnp.exp(-jnp.abs(x)))
    return jnp.mean(loss)


if __name__ == "__main__":
    key = jax.random.PRNGKey(0)
    # Discriminator-style logits output, NCHW: batch=2, channels=4, spatial=16.
    x = jax.random.normal(key, (2, 4, 16, 16), dtype=jnp.float32) * 3.0
    x_bf16 = x.astype(jnp.bfloat16)

    ok = True
    for mode, isreal, tgt in [("g", True, 1.0), ("d", True, 1.0), ("d", False, 0.0)]:
        got = jax.block_until_ready(bloss(x, mode, isreal))
        want = _reference_bce_with_logits(x, tgt)
        if not jnp.allclose(got, want, rtol=1e-5, atol=1e-6):
            ok = False
            print(f"MISMATCH f32 mode={mode} isreal={isreal}: {got} vs {want}")

    # bf16 logits: on v6e/v7x the softplus math runs in bf16 on the EUP with
    # f32 accumulation, so the tolerance is correspondingly looser.
    got_bf16 = jax.block_until_ready(bloss(x_bf16, "d", False))
    want_bf16 = _reference_bce_with_logits(x_bf16, 0.0)
    if not jnp.allclose(got_bf16, want_bf16, rtol=2e-2, atol=2e-3):
        ok = False
        print(f"MISMATCH bf16: {got_bf16} vs {want_bf16}")

    # Odd, non-lane-aligned shape exercises the masked (ragged) last tile path.
    x_odd = jax.random.normal(jax.random.PRNGKey(1), (3, 5, 7), dtype=jnp.float32)
    got_odd = jax.block_until_ready(bloss(x_odd, "g"))
    want_odd = _reference_bce_with_logits(x_odd, 1.0)
    if not jnp.allclose(got_odd, want_odd, rtol=1e-5, atol=1e-6):
        ok = False
        print(f"MISMATCH odd-shape: {got_odd} vs {want_odd}")

    if ok:
        print("KERNEL_OK")
</pallas_src>

<mosaic_0001>
module attributes {stable_mosaic.version = 11 : i64} {
  func.func @_bce_partial_sums_kernel(%arg0: i32, %arg1: memref<128x16xf32, #tpu.memory_space<vmem>>, %arg2: memref<32x16xf32, #tpu.memory_space<vmem>>) attributes {dimension_semantics = [#tpu.dimension_semantics<parallel>], iteration_bounds = array<i64: 1>, scalar_prefetch = 0 : i64, scratch_operands = 0 : i64, tpu.core_type = #tpu.core_type<tc>, window_params = [{transform_indices = @transform_0, window_bounds = array<i64: 128, 16>}, {transform_indices = @transform_1, window_bounds = array<i64: 32, 16>}]} {
    %c0 = arith.constant 0 : index
    %c0_0 = arith.constant 0 : index
    %0 = vector.load %arg1[%c0, %c0_0] : memref<128x16xf32, #tpu.memory_space<vmem>>, vector<128x16xf32>
    %cst = arith.constant 0.000000e+00 : f32
    %1 = vector.broadcast %cst : f32 to vector<128x16xf32>
    %2 = arith.subf %1, %0 : vector<128x16xf32>
    %cst_1 = arith.constant 0.000000e+00 : f32
    %3 = vector.broadcast %cst_1 : f32 to vector<128x16xf32>
    %4 = arith.maximumf %2, %3 : vector<128x16xf32>
    %5 = math.absf %2 : vector<128x16xf32>
    %cst_2 = arith.constant 0.000000e+00 : f32
    %6 = vector.broadcast %cst_2 : f32 to vector<128x16xf32>
    %7 = arith.subf %6, %5 : vector<128x16xf32>
    %8 = math.exp %7 : vector<128x16xf32>
    %9 = math.log1p %8 : vector<128x16xf32>
    %10 = arith.addf %4, %9 : vector<128x16xf32>
    %11 = vector.shape_cast %10 : vector<128x16xf32> to vector<4x32x16xf32>
    %cst_3 = arith.constant dense<0.000000e+00> : vector<32x16xf32>
    %12 = vector.multi_reduction <add>, %11, %cst_3 [0] : vector<4x32x16xf32> to vector<32x16xf32>
    %c0_4 = arith.constant 0 : index
    %c0_5 = arith.constant 0 : index
    %13 = vector.load %arg2[%c0_4, %c0_5] : memref<32x16xf32, #tpu.memory_space<vmem>>, vector<32x16xf32>
    tpu.vector_store %arg2[%c0_4, %c0_5], %12 {strides = array<i32>} : memref<32x16xf32, #tpu.memory_space<vmem>>, vector<32x16xf32>,
    return
  }
  func.func @transform_0(%arg0: i32) -> (i32, i32) {
    %c0_i32 = arith.constant 0 : i32
    %c0_i32_0 = arith.constant 0 : i32
    return %arg0, %c0_i32 : i32, i32
  }
  func.func @transform_1(%arg0: i32) -> (i32, i32) {
    %c0_i32 = arith.constant 0 : i32
    %c0_i32_0 = arith.constant 0 : i32
    return %arg0, %c0_i32 : i32, i32
  }
}

</mosaic_0001>

<llo_original>
// kernel: bloss.1
$region0: #{bloss.1}
  #allocation0 [shape = 'u32[]', space=smem, size = 0x4, offset = 0x4, fixed_abs, tag = 'smem constant byte address 0x4 - core index']
  #allocation1 [shape = 'u32[72,128]{1,0:T(1,128)}', space=vmem, size = 0x9000, scoped, tag = 'internal scratch']
  %s0 = inlined_call_operand.hbm [shape: f32[128,16], index: 0, kind: input, shape index: {}]
  %s1 = inlined_call_operand.vmem [shape: f32[32,16], index: 1, kind: output, shape index: {}]
  %s2 = sld [smem:[#allocation0]]
  $region18: #{bloss.1} parent=0
    _
  %s4 = ssub.s32 1, %s2
  %s5 = scalar_select 0, %s4, %s2
  $region1: #{bloss.1} parent=0
    #allocation2 [shape = 'u8[65536]{0}', space=vmem, size = 0x10000, scoped, tag = 'input window, operand 0, single buffered']
    #allocation3 [shape = 's32[1]{0}', space=sflag, size = 0x4, scoped, tag = 'scoped memory for bloss.1']
    %6 = vsyncpa [#allocation3], 0
    // Predicated region
    $region2: #{bloss.1} parent=1 // pred_check
      _
    $region3: #{bloss.1} parent=1 // pred_check_branch
      %8 = sbr.rel (0) target = $region5
    $region4: #{bloss.1} parent=1 // pred_region
      %10 = vsyncadd [#allocation3], 0
      %s11 = sshll.u32 %s0, 4
      %s12 = int_to_ptr.hbm [resolvable:$true] %s11
      %s13 = sshll.u32 [#allocation2], 4
      %s14 = int_to_ptr.vmem [resolvable:$true] %s13
      %19 = dma.hbm_to_vmem [thread:$0]  %s12, 2048, %s14, [#allocation3], 128, 128, 8
    $region5: #{bloss.1} parent=1 // pred_fallthru
      _
    // Predicated region
    $region6: #{bloss.1} parent=1 // pred_check
      _
    $region7: #{bloss.1} parent=1 // pred_check_branch
      %21 = sbr.rel (0) target = $region9
    $region8: #{bloss.1} parent=1 // pred_region
      %23 = dma.done [#allocation3], 2048
    $region9: #{bloss.1} parent=1 // pred_fallthru
      _
    %v24 = vld [vmem:[#allocation2] sm:$0xff]
    %v25 = vld [vmem:[#allocation2 + $0x8] sm:$0xff]
    %v26 = vld [vmem:[#allocation2 + $0x10] sm:$0xff]
    %v27 = vld [vmem:[#allocation2 + $0x18] sm:$0xff]
    %v28 = vld [vmem:[#allocation2 + $0x20] sm:$0xff]
    %v29 = vld [vmem:[#allocation2 + $0x28] sm:$0xff]
    %v30 = vld [vmem:[#allocation2 + $0x30] sm:$0xff]
    %v31 = vld [vmem:[#allocation2 + $0x38] sm:$0xff]
    %v32 = vld [vmem:[#allocation2 + $0x40] sm:$0xff]
    %v33 = vld [vmem:[#allocation2 + $0x48] sm:$0xff]
    %v34 = vld [vmem:[#allocation2 + $0x50] sm:$0xff]
    %v35 = vld [vmem:[#allocation2 + $0x58] sm:$0xff]
    %v36 = vld [vmem:[#allocation2 + $0x60] sm:$0xff]
    %v37 = vld [vmem:[#allocation2 + $0x68] sm:$0xff]
    %v38 = vld [vmem:[#allocation2 + $0x70] sm:$0xff]
    %v39 = vld [vmem:[#allocation2 + $0x78] sm:$0xff]
    %v40 = vsub.f32 0.0, %v24
    %v41 = vsub.f32 0.0, %v25
    %v42 = vsub.f32 0.0, %v26
    %v43 = vsub.f32 0.0, %v27
    %v44 = vsub.f32 0.0, %v28
    %v45 = vsub.f32 0.0, %v29
    %v46 = vsub.f32 0.0, %v30
    %v47 = vsub.f32 0.0, %v31
    %v48 = vsub.f32 0.0, %v32
    %v49 = vsub.f32 0.0, %v33
    %v50 = vsub.f32 0.0, %v34
    %v51 = vsub.f32 0.0, %v35
    %v52 = vsub.f32 0.0, %v36
    %v53 = vsub.f32 0.0, %v37
    %v54 = vsub.f32 0.0, %v38
    %v55 = vsub.f32 0.0, %v39
    %v56 = vmax.f32 %v40, 0.0
    %v57 = vmax.f32 %v41, 0.0
    %v58 = vmax.f32 %v42, 0.0
    %v59 = vmax.f32 %v43, 0.0
    %v60 = vmax.f32 %v44, 0.0
    %v61 = vmax.f32 %v45, 0.0
    %v62 = vmax.f32 %v46, 0.0
    %v63 = vmax.f32 %v47, 0.0
    %v64 = vmax.f32 %v48, 0.0
    %v65 = vmax.f32 %v49, 0.0
    %v66 = vmax.f32 %v50, 0.0
    %v67 = vmax.f32 %v51, 0.0
    %v68 = vmax.f32 %v52, 0.0
    %v69 = vmax.f32 %v53, 0.0
    %v70 = vmax.f32 %v54, 0.0
    %v71 = vmax.f32 %v55, 0.0
    %v72 = vand.u32 2147483647, %v40
    %v73 = vand.u32 2147483647, %v41
    %v74 = vand.u32 2147483647, %v42
    %v75 = vand.u32 2147483647, %v43
    %v76 = vand.u32 2147483647, %v44
    %v77 = vand.u32 2147483647, %v45
    %v78 = vand.u32 2147483647, %v46
    %v79 = vand.u32 2147483647, %v47
    %v80 = vand.u32 2147483647, %v48
    %v81 = vand.u32 2147483647, %v49
    %v82 = vand.u32 2147483647, %v50
    %v83 = vand.u32 2147483647, %v51
    %v84 = vand.u32 2147483647, %v52
    %v85 = vand.u32 2147483647, %v53
    %v86 = vand.u32 2147483647, %v54
    %v87 = vand.u32 2147483647, %v55
    %v88 = vsub.f32 0.0, %v72
    %v89 = vsub.f32 0.0, %v73
    %v90 = vsub.f32 0.0, %v74
    %v91 = vsub.f32 0.0, %v75
    %v92 = vsub.f32 0.0, %v76
    %v93 = vsub.f32 0.0, %v77
    %v94 = vsub.f32 0.0, %v78
    %v95 = vsub.f32 0.0, %v79
    %v96 = vsub.f32 0.0, %v80
    %v97 = vsub.f32 0.0, %v81
    %v98 = vsub.f32 0.0, %v82
    %v99 = vsub.f32 0.0, %v83
    %v100 = vsub.f32 0.0, %v84
    %v101 = vsub.f32 0.0, %v85
    %v102 = vsub.f32 0.0, %v86
    %v103 = vsub.f32 0.0, %v87
    %v104 = vmul.f32 %v88, 1.442695
    %v105 = vpow.pop %v104
    %v106 = vmul.f32 %v89, 1.442695
    %v107 = vpow.pop %v106
    %v108 = vmul.f32 %v90, 1.442695
    %v109 = vpow.pop %v108
    %v110 = vmul.f32 %v91, 1.442695
    %v111 = vpow.pop %v110
    %v112 = vmul.f32 %v92, 1.442695
    %v113 = vpow.pop %v112
    %v114 = vmul.f32 %v93, 1.442695
    %v115 = vpow.pop %v114
    %v116 = vmul.f32 %v94, 1.442695
    %v117 = vpow.pop %v116
    %v118 = vmul.f32 %v95, 1.442695
    %v119 = vpow.pop %v118
    %v120 = vmul.f32 %v96, 1.442695
    %v121 = vpow.pop %v120
    %v122 = vmul.f32 %v97, 1.442695
    %v123 = vpow.pop %v122
    %v124 = vmul.f32 %v98, 1.442695
    %v125 = vpow.pop %v124
    %v126 = vmul.f32 %v99, 1.442695
    %v127 = vpow.pop %v126
    %v128 = vmul.f32 %v100, 1.442695
    %v129 = vpow.pop %v128
    %v130 = vmul.f32 %v101, 1.442695
    %v131 = vpow.pop %v130
    %v132 = vmul.f32 %v102, 1.442695
    %v133 = vpow.pop %v132
    %v134 = vmul.f32 %v103, 1.442695
    %v135 = vpow.pop %v134
    %v136 = vadd.f32 %v105, 1.0
    %v137 = vlog2.pop %v136
    %v138 = vmul.f32 %v137, 0.6931472
    %v139 = vmul.f32 -0.5, %v105
    %v140 = vadd.f32 %v139, 1.0
    %v141 = vmul.f32 %v140, %v105
    %v142 = vand.u32 2147483647, %v105
    %vm143 = vcmp.lt.f32.partialorder %v142, 0.0004427343
    %v144 = vsel %vm143, %v141, %v138
    %v145 = vadd.f32 %v107, 1.0
    %v146 = vlog2.pop %v145
    %v147 = vmul.f32 %v146, 0.6931472
    %v148 = vmul.f32 -0.5, %v107
    %v149 = vadd.f32 %v148, 1.0
    %v150 = vmul.f32 %v149, %v107
    %v151 = vand.u32 2147483647, %v107
    %vm152 = vcmp.lt.f32.partialorder %v151, 0.0004427343
    %v153 = vsel %vm152, %v150, %v147
    %v154 = vadd.f32 %v109, 1.0
    %v155 = vlog2.pop %v154
    %v156 = vmul.f32 %v155, 0.6931472
    %v157 = vmul.f32 -0.5, %v109
    %v158 = vadd.f32 %v157, 1.0
    %v159 = vmul.f32 %v158, %v109
    %v160 = vand.u32 2147483647, %v109
    %vm161 = vcmp.lt.f32.partialorder %v160, 0.0004427343
    %v162 = vsel %vm161, %v159, %v156
    %v163 = vadd.f32 %v111, 1.0
    %v164 = vlog2.pop %v163
    %v165 = vmul.f32 %v164, 0.6931472
    %v166 = vmul.f32 -0.5, %v111
    %v167 = vadd.f32 %v166, 1.0
    %v168 = vmul.f32 %v167, %v111
    %v169 = vand.u32 2147483647, %v111
    %vm170 = vcmp.lt.f32.partialorder %v169, 0.0004427343
    %v171 = vsel %vm170, %v168, %v165
    %v172 = vadd.f32 %v113, 1.0
    %v173 = vlog2.pop %v172
    %v174 = vmul.f32 %v173, 0.6931472
    %v175 = vmul.f32 -0.5, %v113
    %v176 = vadd.f32 %v175, 1.0
    %v177 = vmul.f32 %v176, %v113
    %v178 = vand.u32 2147483647, %v113
    %vm179 = vcmp.lt.f32.partialorder %v178, 0.0004427343
    %v180 = vsel %vm179, %v177, %v174
    %v181 = vadd.f32 %v115, 1.0
    %v182 = vlog2.pop %v181
    %v183 = vmul.f32 %v182, 0.6931472
    %v184 = vmul.f32 -0.5, %v115
    %v185 = vadd.f32 %v184, 1.0
    %v186 = vmul.f32 %v185, %v115
    %v187 = vand.u32 2147483647, %v115
    %vm188 = vcmp.lt.f32.partialorder %v187, 0.0004427343
    %v189 = vsel %vm188, %v186, %v183
    %v190 = vadd.f32 %v117, 1.0
    %v191 = vlog2.pop %v190
    %v192 = vmul.f32 %v191, 0.6931472
    %v193 = vmul.f32 -0.5, %v117
    %v194 = vadd.f32 %v193, 1.0
    %v195 = vmul.f32 %v194, %v117
    %v196 = vand.u32 2147483647, %v117
    %vm197 = vcmp.lt.f32.partialorder %v196, 0.0004427343
    %v198 = vsel %vm197, %v195, %v192
    %v199 = vadd.f32 %v119, 1.0
    %v200 = vlog2.pop %v199
    %v201 = vmul.f32 %v200, 0.6931472
    %v202 = vmul.f32 -0.5, %v119
    %v203 = vadd.f32 %v202, 1.0
    %v204 = vmul.f32 %v203, %v119
    %v205 = vand.u32 2147483647, %v119
    %vm206 = vcmp.lt.f32.partialorder %v205, 0.0004427343
    %v207 = vsel %vm206, %v204, %v201
    %v208 = vadd.f32 %v121, 1.0
    %v209 = vlog2.pop %v208
    %v210 = vmul.f32 %v209, 0.6931472
    %v211 = vmul.f32 -0.5, %v121
    %v212 = vadd.f32 %v211, 1.0
    %v213 = vmul.f32 %v212, %v121
    %v214 = vand.u32 2147483647, %v121
    %vm215 = vcmp.lt.f32.partialorder %v214, 0.0004427343
    %v216 = vsel %vm215, %v213, %v210
    %v217 = vadd.f32 %v123, 1.0
    %v218 = vlog2.pop %v217
    %v219 = vmul.f32 %v218, 0.6931472
    %v220 = vmul.f32 -0.5, %v123
    %v221 = vadd.f32 %v220, 1.0
    %v222 = vmul.f32 %v221, %v123
    %v223 = vand.u32 2147483647, %v123
    %vm224 = vcmp.lt.f32.partialorder %v223, 0.0004427343
    %v225 = vsel %vm224, %v222, %v219
    %v226 = vadd.f32 %v125, 1.0
    %v227 = vlog2.pop %v226
    %v228 = vmul.f32 %v227, 0.6931472
    %v229 = vmul.f32 -0.5, %v125
    %v230 = vadd.f32 %v229, 1.0
    %v231 = vmul.f32 %v230, %v125
    %v232 = vand.u32 2147483647, %v125
    %vm233 = vcmp.lt.f32.partialorder %v232, 0.0004427343
    %v234 = vsel %vm233, %v231, %v228
    %v235 = vadd.f32 %v127, 1.0
    %v236 = vlog2.pop %v235
    %v237 = vmul.f32 %v236, 0.6931472
    %v238 = vmul.f32 -0.5, %v127
    %v239 = vadd.f32 %v238, 1.0
    %v240 = vmul.f32 %v239, %v127
    %v241 = vand.u32 2147483647, %v127
    %vm242 = vcmp.lt.f32.partialorder %v241, 0.0004427343
    %v243 = vsel %vm242, %v240, %v237
    %v244 = vadd.f32 %v129, 1.0
    %v245 = vlog2.pop %v244
    %v246 = vmul.f32 %v245, 0.6931472
    %v247 = vmul.f32 -0.5, %v129
    %v248 = vadd.f32 %v247, 1.0
    %v249 = vmul.f32 %v248, %v129
    %v250 = vand.u32 2147483647, %v129
    %vm251 = vcmp.lt.f32.partialorder %v250, 0.0004427343
    %v252 = vsel %vm251, %v249, %v246
    %v253 = vadd.f32 %v131, 1.0
    %v254 = vlog2.pop %v253
    %v255 = vmul.f32 %v254, 0.6931472
    %v256 = vmul.f32 -0.5, %v131
    %v257 = vadd.f32 %v256, 1.0
    %v258 = vmul.f32 %v257, %v131
    %v259 = vand.u32 2147483647, %v131
    %vm260 = vcmp.lt.f32.partialorder %v259, 0.0004427343
    %v261 = vsel %vm260, %v258, %v255
    %v262 = vadd.f32 %v133, 1.0
    %v263 = vlog2.pop %v262
    %v264 = vmul.f32 %v263, 0.6931472
    %v265 = vmul.f32 -0.5, %v133
    %v266 = vadd.f32 %v265, 1.0
    %v267 = vmul.f32 %v266, %v133
    %v268 = vand.u32 2147483647, %v133
    %vm269 = vcmp.lt.f32.partialorder %v268, 0.0004427343
    %v270 = vsel %vm269, %v267, %v264
    %v271 = vadd.f32 %v135, 1.0
    %v272 = vlog2.pop %v271
    %v273 = vmul.f32 %v272, 0.6931472
    %v274 = vmul.f32 -0.5, %v135
    %v275 = vadd.f32 %v274, 1.0
    %v276 = vmul.f32 %v275, %v135
    %v277 = vand.u32 2147483647, %v135
    %vm278 = vcmp.lt.f32.partialorder %v277, 0.0004427343
    %v279 = vsel %vm278, %v276, %v273
    %v280 = vadd.f32 %v56, %v144
    %v281 = vadd.f32 %v57, %v153
    %v282 = vadd.f32 %v58, %v162
    %v283 = vadd.f32 %v59, %v171
    %v284 = vadd.f32 %v60, %v180
    %v285 = vadd.f32 %v61, %v189
    %v286 = vadd.f32 %v62, %v198
    %v287 = vadd.f32 %v63, %v207
    %v288 = vadd.f32 %v64, %v216
    %v289 = vadd.f32 %v65, %v225
    %v290 = vadd.f32 %v66, %v234
    %v291 = vadd.f32 %v67, %v243
    %v292 = vadd.f32 %v68, %v252
    %v293 = vadd.f32 %v69, %v261
    %v294 = vadd.f32 %v70, %v270
    %v295 = vadd.f32 %v71, %v279
    %vm296 = vcmask 130048
    %v297 = vsel %vm296, %v280, 0.0
    %v298 = vsel %vm296, %v284, 0.0
    %v299 = vadd.f32 %v297, %v298
    %v300 = vsel %vm296, %v288, 0.0
    %v301 = vadd.f32 %v299, %v300
    %v302 = vsel %vm296, %v292, 0.0
    %v303 = vadd.f32 %v301, %v302
    %v304 = vsel %vm296, %v281, 0.0
    %v305 = vsel %vm296, %v285, 0.0
    %v306 = vadd.f32 %v304, %v305
    %v307 = vsel %vm296, %v289, 0.0
    %v308 = vadd.f32 %v306, %v307
    %v309 = vsel %vm296, %v293, 0.0
    %v310 = vadd.f32 %v308, %v309
    %v311 = vsel %vm296, %v282, 0.0
    %v312 = vsel %vm296, %v286, 0.0
    %v313 = vadd.f32 %v311, %v312
    %v314 = vsel %vm296, %v290, 0.0
    %v315 = vadd.f32 %v313, %v314
    %v316 = vsel %vm296, %v294, 0.0
    %v317 = vadd.f32 %v315, %v316
    %v318 = vsel %vm296, %v283, 0.0
    %v319 = vsel %vm296, %v287, 0.0
    %v320 = vadd.f32 %v318, %v319
    %v321 = vsel %vm296, %v291, 0.0
    %v322 = vadd.f32 %v320, %v321
    %v323 = vsel %vm296, %v295, 0.0
    %v324 = vadd.f32 %v322, %v323
    %325 = vst.msk [vmem:[%s1] sm:$0xff] %vm296, %v303
    %326 = vst.msk [vmem:[%s1 + $0x8] sm:$0xff] %vm296, %v310
    %327 = vst.msk [vmem:[%s1 + $0x10] sm:$0xff] %vm296, %v317
    %328 = vst.msk [vmem:[%s1 + $0x18] sm:$0xff] %vm296, %v324
    // Predicated region
    $region10: #{bloss.1} parent=1 // pred_check
      _
    $region11: #{bloss.1} parent=1 // pred_check_branch
      %330 = sbr.rel (0) target = $region13
    $region12: #{bloss.1} parent=1 // pred_region
      _
    $region13: #{bloss.1} parent=1 // pred_fallthru
      _
    // Predicated region
    $region14: #{bloss.1} parent=1 // pred_check
      _
    $region15: #{bloss.1} parent=1 // pred_check_branch
      %332 = sbr.rel (0) target = $region17
    $region16: #{bloss.1} parent=1 // pred_region
      _
    $region17: #{bloss.1} parent=1 // pred_fallthru
      _
    %333 = vsyncpa [#allocation3], 1

</llo_original>
